<compile_context>
chip_gen: v6e
topology: v6e:2x2x1
jax: 0.10.0
libtpu: 0.0.40
codegen_flags: <defaults>
</compile_context>

<pallas_src>
import functools

import jax
import jax.numpy as jnp
from jax.experimental import pallas as pl
from jax.experimental.pallas import tpu as pltpu


def _round_up(v, m):
    return (v + m - 1) // m * m


def _gcn_layer1_kernel(a_ref, x_ref, w1_ref, b1_ref, h_ref):
    """h_tile = relu((A_tile @ X) @ W1 + b1), stored lane-dense in bf16."""
    agg = jnp.dot(a_ref[...], x_ref[...], preferred_element_type=jnp.float32)
    h = jnp.dot(agg, w1_ref[...], preferred_element_type=jnp.float32) + b1_ref[...]
    h_ref[...] = jnp.maximum(h, 0.0).astype(h_ref.dtype)


def _gcn_layer2_kernel(a_ref, h_ref, w2_ref, b2_ref, o_ref, *, dim_out):
    """out_tile = log_softmax((A_tile @ h) @ W2 + b2) masked to the real lanes."""
    agg = jnp.dot(a_ref[...], h_ref[...], preferred_element_type=jnp.float32)
    z = jnp.dot(agg, w2_ref[...], preferred_element_type=jnp.float32) + b2_ref[...]

    # masked log_softmax over the first `dim_out` lanes (rest are zero padding)
    lane = jax.lax.broadcasted_iota(jnp.int32, z.shape, 1)
    valid = lane < dim_out
    zm = jnp.where(valid, z, -1e30)
    m = jnp.max(zm, axis=1, keepdims=True)
    e = jnp.where(valid, jnp.exp(zm - m), 0.0)
    lse = jnp.log(jnp.sum(e, axis=1, keepdims=True))
    o_ref[...] = jnp.where(valid, z - m - lse, 0.0)


def gcn_forward(a_hat, x, w1, b1, w2, b2, *, tm=128):
    """Two row-tiled Pallas calls (layer1 -> h, layer2 -> log_softmax output).

    tm: node-row tile. Keep tm * N_pad * 2 bytes * 2 buffers well under the
    scoped VMEM limit (use tm <= 256 on v7x at large N, 64 MiB physical VMEM).
    """
    n, f_in = x.shape
    dim_h = w1.shape[1]
    dim_out = w2.shape[1]

    n_pad = _round_up(n, tm)          # row-tile aligned node count
    hp = _round_up(dim_h, 128)        # lane-dense hidden width
    op = _round_up(dim_out, 128)      # lane-dense output width

    f32 = jnp.float32
    bf16 = jnp.bfloat16

    # Zero-pad to TPU-friendly shapes. Padded A rows/cols are zero, so fake
    # nodes never contribute to real rows; padded W/b columns stay zero.
    a_p = jnp.zeros((n_pad, n_pad), bf16).at[:n, :n].set(a_hat.astype(bf16))
    x_p = jnp.zeros((n_pad, f_in), bf16).at[:n, :].set(x.astype(bf16))
    w1_p = jnp.zeros((f_in, hp), f32).at[:, :dim_h].set(w1)
    b1_p = jnp.zeros((1, hp), f32).at[:, :dim_h].set(b1)
    w2_p = jnp.zeros((hp, op), f32).at[:dim_h, :dim_out].set(w2)
    b2_p = jnp.zeros((1, op), f32).at[:, :dim_out].set(b2)

    grid = (n_pad // tm,)
    cparams = pltpu.CompilerParams(
        dimension_semantics=("parallel",),          # v7x: split row tiles over 2 TCs
        vmem_limit_bytes=32 * 1024 * 1024,
    )

    # ---- layer 1: h = relu(A_hat @ X @ W1 + b1) ----------------------------
    h = pl.pallas_call(
        _gcn_layer1_kernel,
        out_shape=jax.ShapeDtypeStruct((n_pad, hp), bf16),
        grid=grid,
        in_specs=[
            pl.BlockSpec((tm, n_pad), lambda i: (i, 0)),   # A_hat row tile (pipelined)
            pl.BlockSpec((n_pad, f_in), lambda i: (0, 0)),  # X resident
            pl.BlockSpec((f_in, hp), lambda i: (0, 0)),     # W1 resident
            pl.BlockSpec((1, hp), lambda i: (0, 0)),        # b1 resident
        ],
        out_specs=pl.BlockSpec((tm, hp), lambda i: (i, 0)),
        compiler_params=cparams,
    )(a_p, x_p, w1_p, b1_p)

    # ---- layer 2: out = log_softmax(A_hat @ h @ W2 + b2) -------------------
    out_p = pl.pallas_call(
        functools.partial(_gcn_layer2_kernel, dim_out=dim_out),
        out_shape=jax.ShapeDtypeStruct((n_pad, op), f32),
        grid=grid,
        in_specs=[
            pl.BlockSpec((tm, n_pad), lambda i: (i, 0)),   # A_hat row tile (pipelined)
            pl.BlockSpec((n_pad, hp), lambda i: (0, 0)),    # h resident (bf16)
            pl.BlockSpec((hp, op), lambda i: (0, 0)),       # W2 resident
            pl.BlockSpec((1, op), lambda i: (0, 0)),        # b2 resident
        ],
        out_specs=pl.BlockSpec((tm, op), lambda i: (i, 0)),
        compiler_params=cparams,
    )(a_p, h, w2_p, b2_p)

    return out_p[:n, :dim_out]


def build_normalized_adjacency(edge_index, num_nodes):
    """Dense A_hat = D^{-1/2} (A + I) D^{-1/2} from a [2, E] edge_index (src, dst).

    Note: duplicate edges are collapsed to weight 1 (PyG scatter-adds them);
    identical for simple graphs such as the test graph below.
    """
    src, dst = edge_index[0], edge_index[1]
    a = jnp.zeros((num_nodes, num_nodes), jnp.float32)
    a = a.at[dst, src].set(1.0)                  # message flows src -> dst
    idx = jnp.arange(num_nodes)
    a = a.at[idx, idx].set(1.0)                  # add self loops
    deg = a.sum(axis=1)
    dinv = 1.0 / jnp.sqrt(deg)
    return dinv[:, None] * a * dinv[None, :]


def glorot(key, shape):
    limit = jnp.sqrt(6.0 / (shape[0] + shape[1]))
    return jax.random.uniform(key, shape, jnp.float32, -limit, limit)


if __name__ == "__main__":
    # TODO(synk): training-mode dropout (p=0.5) is omitted; this implements the
    # eval/inference forward pass where F.dropout is the identity.
    N, E = 256, 1024                 # nodes, edges (small but tiled: grid of 2)
    dim_in, dim_h, dim_out = 32, 32, 8

    key = jax.random.PRNGKey(0)
    kx, ke1, ke2, kw1, kw2 = jax.random.split(key, 5)

    x = jax.random.normal(kx, (N, dim_in), jnp.float32)
    edge_index = jnp.stack([
        jax.random.randint(ke1, (E,), 0, N),
        jax.random.randint(ke2, (E,), 0, N),
    ]).astype(jnp.int32)

    w1 = glorot(kw1, (dim_in, dim_h))
    b1 = jnp.zeros((1, dim_h), jnp.float32)
    w2 = glorot(kw2, (dim_h, dim_out))
    b2 = jnp.zeros((1, dim_out), jnp.float32)

    a_hat = build_normalized_adjacency(edge_index, N)

    out = gcn_forward(a_hat, x, w1, b1, w2, b2)
    jax.block_until_ready(out)

    # Sanity check against a plain-JAX f32 reference. The kernel feeds bf16
    # aggregation operands to the MXU (f32 accumulation), so use a tolerance
    # consistent with bf16 input rounding.
    h_ref = jnp.maximum(a_hat @ (x @ w1) + b1, 0.0)
    h_ref = a_hat @ (h_ref @ w2) + b2
    ref = jax.nn.log_softmax(h_ref, axis=1)

    assert out.shape == (N, dim_out)
    max_err = float(jnp.max(jnp.abs(out - ref)))
    assert max_err < 5e-2, f"max abs error {max_err}"

    print("KERNEL_OK")
</pallas_src>

<mosaic_0001>
module attributes {stable_mosaic.version = 11 : i64} {
  func.func @_gcn_layer1_kernel(%arg0: i32, %arg1: memref<128x256xbf16, #tpu.memory_space<vmem>>, %arg2: memref<256x32xbf16, #tpu.memory_space<vmem>>, %arg3: memref<32x128xf32, #tpu.memory_space<vmem>>, %arg4: memref<1x128xf32, #tpu.memory_space<vmem>>, %arg5: memref<128x128xbf16, #tpu.memory_space<vmem>>) attributes {dimension_semantics = [#tpu.dimension_semantics<parallel>], iteration_bounds = array<i64: 2>, scalar_prefetch = 0 : i64, scratch_operands = 0 : i64, tpu.core_type = #tpu.core_type<tc>, window_params = [{transform_indices = @transform_0, window_bounds = array<i64: 128, 256>}, {pipeline_mode = #tpu.pipeline_mode<synchronous>, transform_indices = @transform_1, window_bounds = array<i64: 256, 32>}, {pipeline_mode = #tpu.pipeline_mode<synchronous>, transform_indices = @transform_2, window_bounds = array<i64: 32, 128>}, {pipeline_mode = #tpu.pipeline_mode<synchronous>, transform_indices = @transform_3, window_bounds = array<i64: 1, 128>}, {transform_indices = @transform_4, window_bounds = array<i64: 128, 128>}]} {
    %c0 = arith.constant 0 : index
    %c0_0 = arith.constant 0 : index
    %0 = vector.load %arg1[%c0, %c0_0] : memref<128x256xbf16, #tpu.memory_space<vmem>>, vector<128x256xbf16>
    %c0_1 = arith.constant 0 : index
    %c0_2 = arith.constant 0 : index
    %1 = vector.load %arg2[%c0_1, %c0_2] : memref<256x32xbf16, #tpu.memory_space<vmem>>, vector<256x32xbf16>
    %cst = arith.constant dense<0.000000e+00> : vector<128x32xf32>
    %2 = tpu.matmul %0, %1, %cst {dimension_numbers = #tpu.dot_dimension_numbers<[1], [0], [0], [1], [0, 0, 1, 1], [], []>} : vector<128x256xbf16>, vector<256x32xbf16>, vector<128x32xf32> -> vector<128x32xf32>
    %c0_3 = arith.constant 0 : index
    %c0_4 = arith.constant 0 : index
    %3 = vector.load %arg3[%c0_3, %c0_4] : memref<32x128xf32, #tpu.memory_space<vmem>>, vector<32x128xf32>
    %cst_5 = arith.constant dense<0.000000e+00> : vector<128x128xf32>
    %4 = tpu.matmul %2, %3, %cst_5 {dimension_numbers = #tpu.dot_dimension_numbers<[1], [0], [0], [1], [0, 0, 1, 1], [], []>} : vector<128x32xf32>, vector<32x128xf32>, vector<128x128xf32> -> vector<128x128xf32>
    %c0_6 = arith.constant 0 : index
    %c0_7 = arith.constant 0 : index
    %5 = vector.load %arg4[%c0_6, %c0_7] : memref<1x128xf32, #tpu.memory_space<vmem>>, vector<1x128xf32>
    %6 = vector.broadcast %5 : vector<1x128xf32> to vector<128x128xf32>
    %7 = arith.addf %4, %6 : vector<128x128xf32>
    %cst_8 = arith.constant 0.000000e+00 : f32
    %8 = vector.broadcast %cst_8 : f32 to vector<128x128xf32>
    %9 = arith.maximumf %7, %8 : vector<128x128xf32>
    %10 = arith.truncf %9 : vector<128x128xf32> to vector<128x128xbf16>
    %c0_9 = arith.constant 0 : index
    %c0_10 = arith.constant 0 : index
    %11 = vector.load %arg5[%c0_9, %c0_10] : memref<128x128xbf16, #tpu.memory_space<vmem>>, vector<128x128xbf16>
    tpu.vector_store %arg5[%c0_9, %c0_10], %10 {strides = array<i32>} : memref<128x128xbf16, #tpu.memory_space<vmem>>, vector<128x128xbf16>,
    return
  }
  func.func @transform_0(%arg0: i32) -> (i32, i32) {
    %c0_i32 = arith.constant 0 : i32
    %c0_i32_0 = arith.constant 0 : i32
    return %arg0, %c0_i32 : i32, i32
  }
  func.func @transform_1(%arg0: i32) -> (i32, i32) {
    %c0_i32 = arith.constant 0 : i32
    %c0_i32_0 = arith.constant 0 : i32
    %c0_i32_1 = arith.constant 0 : i32
    return %c0_i32, %c0_i32_0 : i32, i32
  }
  func.func @transform_2(%arg0: i32) -> (i32, i32) {
    %c0_i32 = arith.constant 0 : i32
    %c0_i32_0 = arith.constant 0 : i32
    %c0_i32_1 = arith.constant 0 : i32
    return %c0_i32, %c0_i32_0 : i32, i32
  }
  func.func @transform_3(%arg0: i32) -> (i32, i32) {
    %c0_i32 = arith.constant 0 : i32
    %c0_i32_0 = arith.constant 0 : i32
    %c0_i32_1 = arith.constant 0 : i32
    return %c0_i32, %c0_i32_0 : i32, i32
  }
  func.func @transform_4(%arg0: i32) -> (i32, i32) {
    %c0_i32 = arith.constant 0 : i32
    %c0_i32_0 = arith.constant 0 : i32
    return %arg0, %c0_i32 : i32, i32
  }
}

</mosaic_0001>

<llo_original>
// kernel: tpu_custom_call.1
$region0: #{tpu_custom_call.1}
  #allocation0 [shape = 'u32[]', space=smem, size = 0x4, offset = 0x4, fixed_abs, tag = 'smem constant byte address 0x4 - core index']
  #allocation1 [shape = 'u32[144,128]{1,0:T(1,128)}', space=vmem, size = 0x12000, scoped, tag = 'internal scratch']
  %s0 = inlined_call_operand.hbm [shape: bf16[256,256], index: 0, kind: input, shape index: {}]
  %s1 = inlined_call_operand.vmem [shape: bf16[256,32], index: 1, kind: input, shape index: {}]
  %s2 = inlined_call_operand.vmem [shape: f32[32,128], index: 2, kind: input, shape index: {}]
  %s3 = inlined_call_operand.vmem [shape: f32[1,128], index: 3, kind: input, shape index: {}]
  %s4 = inlined_call_operand.hbm [shape: bf16[256,128], index: 4, kind: output, shape index: {}]
  %s5 = sld [smem:[#allocation0]]
  $region53: #{tpu_custom_call.1} parent=0
    _
  %s7 = ssub.s32 1, %s5
  %s8 = scalar_select 0, %s7, %s5
  $region1: #{tpu_custom_call.1} parent=0
    #allocation2 [shape = 'u8[131072]{0}', space=vmem, size = 0x20000, scoped, tag = 'input window, operand 0']
    #allocation3 [shape = 's32[2]{0}', space=sflag, size = 0x8, scoped, tag = 'scoped memory for tpu_custom_call.1']
    #allocation4 [shape = 's32[2]{0}', space=sflag, size = 0x8, scoped, tag = 'scoped memory for tpu_custom_call.1']
    #allocation5 [shape = 'u8[65536]{0}', space=vmem, size = 0x10000, scoped, tag = 'output window, operand 0']
    %9 = vsyncpa [#allocation3], 0
    %s10 = scalar_lea.sflag [#allocation3], 1
    %11 = vsyncpa %s10, 0
    %12 = vsyncpa [#allocation4], 0
    %s13 = scalar_lea.sflag [#allocation4], 1
    %14 = vsyncpa %s13, 0
    loop: start=0, step=1, limit=4
    $region2: #{tpu_custom_call.1} parent=1 // loop_pre_header
      _
    $region3: #{tpu_custom_call.1} parent=1 // loop_header
      %s16 = sphi 0, %s20
      %p17 = scmp.ge.s32.totalorder %s16, 4
      %s26 = sphi 0, %s28
      %s29 = sphi 0, %s26
      %s30 = sphi 0, %s29
      %s46 = sphi 0, %s30
      %s50 = sphi 0, %s50
      %s52 = sphi 0, %s50
      %s53 = sphi 0, %s52
      %s67 = sphi 0, %s53
      %s71 = sphi 0, %s71
      %s73 = sphi 0, %s71
      %s74 = sphi 0, %s73
      %s88 = sphi 0, %s74
      %s92 = sphi 0, %s92
      %s94 = sphi 0, %s92
      %s95 = sphi 0, %s94
      %s109 = sphi 0, %s95
      %s115 = sphi 0, %s117
      %s118 = sphi 0, %s115
      %s119 = sphi 0, %s118
      %s135 = sphi 0, %s119
    $region4: #{tpu_custom_call.1} parent=1 // loop_header_branch
      %19 = sbr.rel (%p17) target = $region8
    $region5: #{tpu_custom_call.1} parent=1 // loop_body
      %s21 = ssub.s32 %s16, 1
      %s22 = ssub.s32 %s16, 2
      %s23 = sadd.s32 %s16, 1
      %s24 = ssub.s32 %s16, %s23
      %p25 = scmp.eq.s32.totalorder %s24, 0
      %s27 = sadd.s32 %s26, 1
      %s28 = scalar_select %p25, %s26, %s27
      %p31 = pneg %p25
      %p32 = scmp.eq.s32.totalorder %s16, 1
      %p33 = por %p31, %p32
      %p34 = scmp.ne.s32.totalorder %s26, %s29
      %p35 = scmp.eq.s32.totalorder %s16, 0
      %p36 = por %p34, %p35
      %p37 = scmp.ne.s32.totalorder %s26, %s29
      %p38 = scmp.eq.s32.totalorder %s21, 1
      %p39 = por %p37, %p38
      %p40 = scmp.ne.s32.totalorder %s29, %s30
      %p41 = scmp.eq.s32.totalorder %s21, 0
      %p42 = por %p40, %p41
      %p43 = scmp.ne.s32.totalorder %s29, %s30
      %p44 = scmp.eq.s32.totalorder %s22, 1
      %p45 = por %p43, %p44
      %p47 = scmp.ne.s32.totalorder %s30, %s46
      %p48 = scmp.eq.s32.totalorder %s22, 0
      %p49 = por %p47, %p48
      %s51 = sadd.s32 %s50, 1
      %p54 = scmp.eq.s32.totalorder %s16, 1
      %p55 = scmp.ne.s32.totalorder %s50, %s52
      %p56 = scmp.eq.s32.totalorder %s16, 0
      %p57 = por %p55, %p56
      %p58 = scmp.ne.s32.totalorder %s50, %s52
      %p59 = scmp.eq.s32.totalorder %s21, 1
      %p60 = por %p58, %p59
      %p61 = scmp.ne.s32.totalorder %s52, %s53
      %p62 = scmp.eq.s32.totalorder %s21, 0
      %p63 = por %p61, %p62
      %p64 = scmp.ne.s32.totalorder %s52, %s53
      %p65 = scmp.eq.s32.totalorder %s22, 1
      %p66 = por %p64, %p65
      %p68 = scmp.ne.s32.totalorder %s53, %s67
      %p69 = scmp.eq.s32.totalorder %s22, 0
      %p70 = por %p68, %p69
      %s72 = sadd.s32 %s71, 1
      %p75 = scmp.eq.s32.totalorder %s16, 1
      %p76 = scmp.ne.s32.totalorder %s71, %s73
      %p77 = scmp.eq.s32.totalorder %s16, 0
      %p78 = por %p76, %p77
      %p79 = scmp.ne.s32.totalorder %s71, %s73
      %p80 = scmp.eq.s32.totalorder %s21, 1
      %p81 = por %p79, %p80
      %p82 = scmp.ne.s32.totalorder %s73, %s74
      %p83 = scmp.eq.s32.totalorder %s21, 0
      %p84 = por %p82, %p83
      %p85 = scmp.ne.s32.totalorder %s73, %s74
      %p86 = scmp.eq.s32.totalorder %s22, 1
      %p87 = por %p85, %p86
      %p89 = scmp.ne.s32.totalorder %s74, %s88
      %p90 = scmp.eq.s32.totalorder %s22, 0
      %p91 = por %p89, %p90
      %s93 = sadd.s32 %s92, 1
      %p96 = scmp.eq.s32.totalorder %s16, 1
      %p97 = scmp.ne.s32.totalorder %s92, %s94
      %p98 = scmp.eq.s32.totalorder %s16, 0
      %p99 = por %p97, %p98
      %p100 = scmp.ne.s32.totalorder %s92, %s94
      %p101 = scmp.eq.s32.totalorder %s21, 1
      %p102 = por %p100, %p101
      %p103 = scmp.ne.s32.totalorder %s94, %s95
      %p104 = scmp.eq.s32.totalorder %s21, 0
      %p105 = por %p103, %p104
      %p106 = scmp.ne.s32.totalorder %s94, %s95
      %p107 = scmp.eq.s32.totalorder %s22, 1
      %p108 = por %p106, %p107
      %p110 = scmp.ne.s32.totalorder %s95, %s109
      %p111 = scmp.eq.s32.totalorder %s22, 0
      %p112 = por %p110, %p111
      %s113 = ssub.s32 %s16, %s23
      %p114 = scmp.eq.s32.totalorder %s113, 0
      %s116 = sadd.s32 %s115, 1
      %s117 = scalar_select %p114, %s115, %s116
      %p120 = pneg %p114
      %p121 = scmp.eq.s32.totalorder %s16, 1
      %p122 = por %p120, %p121
      %p123 = scmp.ne.s32.totalorder %s115, %s118
      %p124 = scmp.eq.s32.totalorder %s16, 0
      %p125 = por %p123, %p124
      %p126 = scmp.ne.s32.totalorder %s115, %s118
      %p127 = scmp.eq.s32.totalorder %s21, 1
      %p128 = por %p126, %p127
      %p129 = scmp.ne.s32.totalorder %s118, %s119
      %p130 = scmp.eq.s32.totalorder %s21, 0
      %p131 = por %p129, %p130
      %p132 = scmp.ne.s32.totalorder %s118, %s119
      %p133 = scmp.eq.s32.totalorder %s22, 1
      %p134 = por %p132, %p133
      %p136 = scmp.ne.s32.totalorder %s119, %s135
      %p137 = scmp.eq.s32.totalorder %s22, 0
      %p138 = por %p136, %p137
      %p139 = scmp.le.s32.totalorder 1, %s16
      %p140 = scmp.lt.s32.totalorder %s16, 3
      %p141 = pnand %p139, %p140
      %p142 = pneg %p141
      // Predicated region
      $region9: #{tpu_custom_call.1} parent=5 // pred_check
        _
      $region10: #{tpu_custom_call.1} parent=5 // pred_check_branch
        %144 = sbr.rel (%p141) target = $region12
      $region11: #{tpu_custom_call.1} parent=5 // pred_region
        %s145 = ssub.s32 %s16, 1
        // Predicated region
        $region13: #{tpu_custom_call.1} parent=11 // pred_check
          %p146 = pneg %p63
        $region14: #{tpu_custom_call.1} parent=11 // pred_check_branch
          %148 = sbr.rel (%p146) target = $region16
        $region15: #{tpu_custom_call.1} parent=11 // pred_region
          _
        $region16: #{tpu_custom_call.1} parent=11 // pred_fallthru
          _
        // Predicated region
        $region17: #{tpu_custom_call.1} parent=11 // pred_check
          %p149 = pneg %p84
        $region18: #{tpu_custom_call.1} parent=11 // pred_check_branch
          %151 = sbr.rel (%p149) target = $region20
        $region19: #{tpu_custom_call.1} parent=11 // pred_region
          _
        $region20: #{tpu_custom_call.1} parent=11 // pred_fallthru
          _
        // Predicated region
        $region21: #{tpu_custom_call.1} parent=11 // pred_check
          %p152 = pneg %p105
        $region22: #{tpu_custom_call.1} parent=11 // pred_check_branch
          %154 = sbr.rel (%p152) target = $region24
        $region23: #{tpu_custom_call.1} parent=11 // pred_region
          _
        $region24: #{tpu_custom_call.1} parent=11 // pred_fallthru
          _
      $region12: #{tpu_custom_call.1} parent=5 // pred_fallthru
        _
      %p155 = scmp.lt.s32.totalorder %s16, 2
      // Predicated region
      $region25: #{tpu_custom_call.1} parent=5 // pred_check
        %p156 = pneg %p155
      $region26: #{tpu_custom_call.1} parent=5 // pred_check_branch
        %158 = sbr.rel (%p156) target = $region28
      $region27: #{tpu_custom_call.1} parent=5 // pred_region
        // Predicated region
        $region29: #{tpu_custom_call.1} parent=27 // pred_check
          %p159 = pneg %p36
        $region30: #{tpu_custom_call.1} parent=27 // pred_check_branch
          %161 = sbr.rel (%p159) target = $region32
        $region31: #{tpu_custom_call.1} parent=27 // pred_region
          %s162 = sand.u32 %s26, 1
          %s163 = scalar_lea.sflag [#allocation3], %s162
          %s164 = sand.u32 %s26, 1
          %s165 = smul.addr %s164, 128
          %s166 = scalar_lea.vmem [#allocation2], %s165
          %s167 = smul.u32 16, %s16
          %s169 = ssub.s32 2048, 2048
          %170 = vsyncadd %s163, %s169
          %s171 = smul.addr %s167, 2
          %s172 = smul.addr %s171, 64
          %s173 = scalar_lea.hbm %s0, %s172
          %s174 = sshll.u32 %s166, 4
          %s175 = int_to_ptr.vmem [resolvable:$true] %s174
          %180 = dma.hbm_to_vmem [thread:$0]  %s173, 2048, %s175, %s163, 128, 128, 8
        $region32: #{tpu_custom_call.1} parent=27 // pred_fallthru
          _
      $region28: #{tpu_custom_call.1} parent=5 // pred_fallthru
        _
      %p181 = scmp.le.s32.totalorder 1, %s16
      %p182 = scmp.lt.s32.totalorder %s16, 3
      %p183 = pnand %p181, %p182
      %p184 = pneg %p183
      // Predicated region
      $region33: #{tpu_custom_call.1} parent=5 // pred_check
        _
      $region34: #{tpu_custom_call.1} parent=5 // pred_check_branch
        %186 = sbr.rel (%p183) target = $region36
      $region35: #{tpu_custom_call.1} parent=5 // pred_region
        %s187 = ssub.s32 %s16, 1
        %s188 = sand.u32 %s29, 1
        %s189 = scalar_lea.sflag [#allocation3], %s188
        %s190 = sand.u32 %s29, 1
        %s191 = smul.addr %s190, 128
        %s192 = scalar_lea.vmem [#allocation2], %s191
        // Predicated region
        $region37: #{tpu_custom_call.1} parent=35 // pred_check
          %p193 = pneg %p42
        $region38: #{tpu_custom_call.1} parent=35 // pred_check_branch
          %195 = sbr.rel (%p193) target = $region40
        $region39: #{tpu_custom_call.1} parent=35 // pred_region
          %196 = dma.done %s189, 2048
        $region40: #{tpu_custom_call.1} parent=35 // pred_fallthru
          _
        %s197 = sand.u32 %s29, 1
        %s198 = scalar_lea.sflag [#allocation3], %s197
        %s199 = sand.u32 %s29, 1
        %s200 = smul.addr %s199, 128
        %s201 = scalar_lea.vmem [#allocation2], %s200
        %p202 = pneg %p42
        %p203 = pneg %p39
        %p204 = pneg %p63
        %p205 = pneg %p60
        %p206 = pneg %p84
        %p207 = pneg %p81
        %p208 = pneg %p105
        %p209 = pneg %p102
        %p210 = pneg %p131
        %p211 = pneg %p128
        %s212 = sand.u32 %s118, 1
        %s213 = scalar_lea.sflag [#allocation4], %s212
        %s214 = sand.u32 %s118, 1
        %s215 = smul.addr %s214, 64
        %s216 = scalar_lea.vmem [#allocation5], %s215
        %s217 = smul.u32 16, %s21
        %s218 = smul.u32 16, %s21
        %v220 = vld [vmem:[%s192] sm:$0xff]
        %v221 = vld [vmem:[%s192 + $0x8] sm:$0xff]
        %v222 = vld [vmem:[%s192 + $0x10] sm:$0xff]
        %v223 = vld [vmem:[%s192 + $0x18] sm:$0xff]
        %v224 = vld [vmem:[%s192 + $0x20] sm:$0xff]
        %v225 = vld [vmem:[%s192 + $0x28] sm:$0xff]
        %v226 = vld [vmem:[%s192 + $0x30] sm:$0xff]
        %v227 = vld [vmem:[%s192 + $0x38] sm:$0xff]
        %v228 = vld [vmem:[%s192 + $0x40] sm:$0xff]
        %v229 = vld [vmem:[%s192 + $0x48] sm:$0xff]
        %v230 = vld [vmem:[%s192 + $0x50] sm:$0xff]
        %v231 = vld [vmem:[%s192 + $0x58] sm:$0xff]
        %v232 = vld [vmem:[%s192 + $0x60] sm:$0xff]
        %v233 = vld [vmem:[%s192 + $0x68] sm:$0xff]
        %v234 = vld [vmem:[%s192 + $0x70] sm:$0xff]
        %v235 = vld [vmem:[%s192 + $0x78] sm:$0xff]
        %v236 = vld [vmem:[%s1] sm:$0xf]
        %v237 = vld [vmem:[%s1 + $0x4] sm:$0xf]
        %v238 = vld [vmem:[%s1 + $0x8] sm:$0xf]
        %v239 = vld [vmem:[%s1 + $0xc] sm:$0xf]
        %v240 = vld [vmem:[%s1 + $0x10] sm:$0xf]
        %v241 = vld [vmem:[%s1 + $0x14] sm:$0xf]
        %v242 = vld [vmem:[%s1 + $0x18] sm:$0xf]
        %v243 = vld [vmem:[%s1 + $0x1c] sm:$0xf]
        %v244 = vld [vmem:[%s1 + $0x20] sm:$0xf]
        %v245 = vld [vmem:[%s1 + $0x24] sm:$0xf]
        %v246 = vld [vmem:[%s1 + $0x28] sm:$0xf]
        %v247 = vld [vmem:[%s1 + $0x2c] sm:$0xf]
        %v248 = vld [vmem:[%s1 + $0x30] sm:$0xf]
        %v249 = vld [vmem:[%s1 + $0x34] sm:$0xf]
        %v250 = vld [vmem:[%s1 + $0x38] sm:$0xf]
        %v251 = vld [vmem:[%s1 + $0x3c] sm:$0xf]
        %v252 = vld [vmem:[%s1 + $0x40] sm:$0xf]
        %v253 = vld [vmem:[%s1 + $0x44] sm:$0xf]
        %v254 = vld [vmem:[%s1 + $0x48] sm:$0xf]
        %v255 = vld [vmem:[%s1 + $0x4c] sm:$0xf]
        %v256 = vld [vmem:[%s1 + $0x50] sm:$0xf]
        %v257 = vld [vmem:[%s1 + $0x54] sm:$0xf]
        %v258 = vld [vmem:[%s1 + $0x58] sm:$0xf]
        %v259 = vld [vmem:[%s1 + $0x5c] sm:$0xf]
        %v260 = vld [vmem:[%s1 + $0x60] sm:$0xf]
        %v261 = vld [vmem:[%s1 + $0x64] sm:$0xf]
        %v262 = vld [vmem:[%s1 + $0x68] sm:$0xf]
        %v263 = vld [vmem:[%s1 + $0x6c] sm:$0xf]
        %v264 = vld [vmem:[%s1 + $0x70] sm:$0xf]
        %v265 = vld [vmem:[%s1 + $0x74] sm:$0xf]
        %v266 = vld [vmem:[%s1 + $0x78] sm:$0xf]
        %v267 = vld [vmem:[%s1 + $0x7c] sm:$0xf]
        %v284 = vunpack.c.l.b16 %v220
        %v285 = vunpack.c.h.b16 %v220
        %v286 = vunpack.c.l.b16 %v221
        %v287 = vunpack.c.h.b16 %v221
        %v288 = vunpack.c.l.b16 %v222
        %v289 = vunpack.c.h.b16 %v222
        %v290 = vunpack.c.l.b16 %v223
        %v291 = vunpack.c.h.b16 %v223
        %v292 = vunpack.c.l.b16 %v224
        %v293 = vunpack.c.h.b16 %v224
        %v294 = vunpack.c.l.b16 %v225
        %v295 = vunpack.c.h.b16 %v225
        %v296 = vunpack.c.l.b16 %v226
        %v297 = vunpack.c.h.b16 %v226
        %v298 = vunpack.c.l.b16 %v227
        %v299 = vunpack.c.h.b16 %v227
        %v300 = vunpack.c.l.b16 %v228
        %v301 = vunpack.c.h.b16 %v228
        %v302 = vunpack.c.l.b16 %v229
        %v303 = vunpack.c.h.b16 %v229
        %v304 = vunpack.c.l.b16 %v230
        %v305 = vunpack.c.h.b16 %v230
        %v306 = vunpack.c.l.b16 %v231
        %v307 = vunpack.c.h.b16 %v231
        %v308 = vunpack.c.l.b16 %v232
        %v309 = vunpack.c.h.b16 %v232
        %v310 = vunpack.c.l.b16 %v233
        %v311 = vunpack.c.h.b16 %v233
        %v312 = vunpack.c.l.b16 %v234
        %v313 = vunpack.c.h.b16 %v234
        %v314 = vunpack.c.l.b16 %v235
        %v315 = vunpack.c.h.b16 %v235
        %v316 = vpack.c.b16 %v286, %v284
        %v317 = vpack.c.b16 %v287, %v285
        %v318 = vpack.c.b16 %v290, %v288
        %v319 = vpack.c.b16 %v291, %v289
        %v320 = vpack.c.b16 %v294, %v292
        %v321 = vpack.c.b16 %v295, %v293
        %v322 = vpack.c.b16 %v298, %v296
        %v323 = vpack.c.b16 %v299, %v297
        %v324 = vpack.c.b16 %v302, %v300
        %v325 = vpack.c.b16 %v303, %v301
        %v326 = vpack.c.b16 %v306, %v304
        %v327 = vpack.c.b16 %v307, %v305
        %v328 = vpack.c.b16 %v310, %v308
        %v329 = vpack.c.b16 %v311, %v309
        %v330 = vpack.c.b16 %v314, %v312
        %v331 = vpack.c.b16 %v315, %v313
        %v380 = vunpack.c.l.b16 %v236
        %v381 = vunpack.c.l.b16 %v237
        %v382 = vunpack.c.l.b16 %v238
        %v383 = vunpack.c.l.b16 %v239
        %v384 = vunpack.c.l.b16 %v240
        %v385 = vunpack.c.l.b16 %v241
        %v386 = vunpack.c.l.b16 %v242
        %v387 = vunpack.c.l.b16 %v243
        %v388 = vunpack.c.l.b16 %v244
        %v389 = vunpack.c.l.b16 %v245
        %v390 = vunpack.c.l.b16 %v246
        %v391 = vunpack.c.l.b16 %v247
        %v392 = vunpack.c.l.b16 %v248
        %v393 = vunpack.c.l.b16 %v249
        %v394 = vunpack.c.l.b16 %v250
        %v395 = vunpack.c.l.b16 %v251
        %v396 = vunpack.c.l.b16 %v252
        %v397 = vunpack.c.l.b16 %v253
        %v398 = vunpack.c.l.b16 %v254
        %v399 = vunpack.c.l.b16 %v255
        %v400 = vunpack.c.l.b16 %v256
        %v401 = vunpack.c.l.b16 %v257
        %v402 = vunpack.c.l.b16 %v258
        %v403 = vunpack.c.l.b16 %v259
        %v404 = vunpack.c.l.b16 %v260
        %v405 = vunpack.c.l.b16 %v261
        %v406 = vunpack.c.l.b16 %v262
        %v407 = vunpack.c.l.b16 %v263
        %v408 = vunpack.c.l.b16 %v264
        %v409 = vunpack.c.l.b16 %v265
        %v410 = vunpack.c.l.b16 %v266
        %v411 = vunpack.c.l.b16 %v267
        %v412 = vpack.c.b16 %v381, %v380
        %v413 = vpack.c.b16 %v383, %v382
        %v414 = vpack.c.b16 %v385, %v384
        %v415 = vpack.c.b16 %v387, %v386
        %v416 = vpack.c.b16 %v389, %v388
        %v417 = vpack.c.b16 %v391, %v390
        %v418 = vpack.c.b16 %v393, %v392
        %v419 = vpack.c.b16 %v395, %v394
        %v420 = vpack.c.b16 %v397, %v396
        %v421 = vpack.c.b16 %v399, %v398
        %v422 = vpack.c.b16 %v401, %v400
        %v423 = vpack.c.b16 %v403, %v402
        %v424 = vpack.c.b16 %v405, %v404
        %v425 = vpack.c.b16 %v407, %v406
        %v426 = vpack.c.b16 %v409, %v408
        %v427 = vpack.c.b16 %v411, %v410
        %444 = vmatprep.subr.bf16.mxu0 0
        %445 = vmatpush1.bf16.msra.mxu0 %v419
        %446 = vmatprep.subr.bf16.mxu0 0
        %447 = vmatpush1.bf16.msra.mxu0 %v418
        %448 = vmatprep.subr.bf16.mxu0 0
        %449 = vmatpush1.bf16.msra.mxu0 %v417
        %450 = vmatprep.subr.bf16.mxu0 0
        %451 = vmatpush1.bf16.msra.mxu0 %v416
        %452 = vmatprep.subr.bf16.mxu0 0
        %453 = vmatpush1.bf16.msra.mxu0 %v415
        %454 = vmatprep.subr.bf16.mxu0 0
        %455 = vmatpush1.bf16.msra.mxu0 %v414
        %456 = vmatprep.subr.bf16.mxu0 0
        %457 = vmatpush1.bf16.msra.mxu0 %v413
        %458 = vmatprep.subr.bf16.mxu0 0
        %459 = vmatpush1.bf16.msra.mxu0 %v412
        %460 = vmatprep.subr.bf16.mxu0 0
        %461 = vmatpush2.bf16.msra.mxu0 %v427
        %462 = vmatprep.subr.bf16.mxu0 0
        %463 = vmatpush2.bf16.msra.mxu0 %v426
        %464 = vmatprep.subr.bf16.mxu0 0
        %465 = vmatpush2.bf16.msra.mxu0 %v425
        %466 = vmatprep.subr.bf16.mxu0 0
        %467 = vmatpush2.bf16.msra.mxu0 %v424
        %468 = vmatprep.subr.bf16.mxu0 0
        %469 = vmatpush2.bf16.msra.mxu0 %v423
        %470 = vmatprep.subr.bf16.mxu0 0
        %471 = vmatpush2.bf16.msra.mxu0 %v422
        %472 = vmatprep.subr.bf16.mxu0 0
        %473 = vmatpush2.bf16.msra.mxu0 %v421
        %474 = vmatprep.subr.bf16.mxu0 0
        %475 = vmatpush2.bf16.msra.mxu0 %v420
        %476 = vmatprep.mubr.bf16.mxu0 %v317
        %477 = vmatmul.mubr.bf16.gmra.mxu0 %v316
        %v478 = vpop.f32.mrf.mxu0
        %v479 = vadd.f32 0.0, %v478
        %v480 = vpop.f32.mrf.mxu0
        %v481 = vpop.f32.mrf.mxu0
        %v482 = vadd.f32 0.0, %v481
        %v483 = vpop.f32.mrf.mxu0
        %484 = vmatprep.mubr.bf16.mxu0 %v319
        %485 = vmatmul.mubr.bf16.gmra.mxu0 %v318
        %v486 = vpop.f32.mrf.mxu0
        %v487 = vadd.f32 0.0, %v486
        %v488 = vpop.f32.mrf.mxu0
        %v489 = vpop.f32.mrf.mxu0
        %v490 = vadd.f32 0.0, %v489
        %v491 = vpop.f32.mrf.mxu0
        %492 = vmatprep.mubr.bf16.mxu0 %v321
        %493 = vmatmul.mubr.bf16.gmra.mxu0 %v320
        %v494 = vpop.f32.mrf.mxu0
        %v495 = vadd.f32 0.0, %v494
        %v496 = vpop.f32.mrf.mxu0
        %v497 = vpop.f32.mrf.mxu0
        %v498 = vadd.f32 0.0, %v497
        %v499 = vpop.f32.mrf.mxu0
        %500 = vmatprep.mubr.bf16.mxu0 %v323
        %501 = vmatmul.mubr.bf16.gmra.mxu0 %v322
        %v502 = vpop.f32.mrf.mxu0
        %v503 = vadd.f32 0.0, %v502
        %v504 = vpop.f32.mrf.mxu0
        %v505 = vpop.f32.mrf.mxu0
        %v506 = vadd.f32 0.0, %v505
        %v507 = vpop.f32.mrf.mxu0
        %508 = vmatprep.mubr.bf16.mxu0 %v325
        %509 = vmatmul.mubr.bf16.gmra.mxu0 %v324
        %v510 = vpop.f32.mrf.mxu0
        %v511 = vadd.f32 0.0, %v510
        %v512 = vpop.f32.mrf.mxu0
        %v513 = vpop.f32.mrf.mxu0
        %v514 = vadd.f32 0.0, %v513
        %v515 = vpop.f32.mrf.mxu0
        %516 = vmatprep.mubr.bf16.mxu0 %v327
        %517 = vmatmul.mubr.bf16.gmra.mxu0 %v326
        %v518 = vpop.f32.mrf.mxu0
        %v519 = vadd.f32 0.0, %v518
        %v520 = vpop.f32.mrf.mxu0
        %v521 = vpop.f32.mrf.mxu0
        %v522 = vadd.f32 0.0, %v521
        %v523 = vpop.f32.mrf.mxu0
        %524 = vmatprep.mubr.bf16.mxu0 %v329
        %525 = vmatmul.mubr.bf16.gmra.mxu0 %v328
        %v526 = vpop.f32.mrf.mxu0
        %v527 = vadd.f32 0.0, %v526
        %v528 = vpop.f32.mrf.mxu0
        %v529 = vpop.f32.mrf.mxu0
        %v530 = vadd.f32 0.0, %v529
        %v531 = vpop.f32.mrf.mxu0
        %532 = vmatprep.mubr.bf16.mxu0 %v331
        %533 = vmatmul.mubr.bf16.gmra.mxu0 %v330
        %v534 = vpop.f32.mrf.mxu0
        %v535 = vadd.f32 0.0, %v534
        %v536 = vpop.f32.mrf.mxu0
        %v537 = vpop.f32.mrf.mxu0
        %v538 = vadd.f32 0.0, %v537
        %v539 = vpop.f32.mrf.mxu0
        %540 = vdwg.mxu0
        %v541 = vld [vmem:[%s2] sm:$0xff]
        %v542 = vld [vmem:[%s2 + $0x8] sm:$0xff]
        %v543 = vld [vmem:[%s2 + $0x10] sm:$0xff]
        %v544 = vld [vmem:[%s2 + $0x18] sm:$0xff]
        %v545 = vld [vmem:[%s3] sm:$0x1]
        %v547 = vlaneseq
        %v548 = vshrl.u32 %v547, 7
        %v549 = vsub.s32 0, %v548
        %v550 = vrot.slane %v545, %v549
        %vm552 = vcmask 261120
        %v554 = vsel %vm552, %v479, 0
        %v557 = vsel %vm552, %v482, 0
        %v560 = vsel %vm552, %v487, 0
        %v563 = vsel %vm552, %v490, 0
        %v566 = vsel %vm552, %v495, 0
        %v569 = vsel %vm552, %v498, 0
        %v572 = vsel %vm552, %v503, 0
        %v575 = vsel %vm552, %v506, 0
        %v578 = vsel %vm552, %v511, 0
        %v581 = vsel %vm552, %v514, 0
        %v584 = vsel %vm552, %v519, 0
        %v587 = vsel %vm552, %v522, 0
        %v590 = vsel %vm552, %v527, 0
        %v593 = vsel %vm552, %v530, 0
        %v596 = vsel %vm552, %v535, 0
        %v599 = vsel %vm552, %v538, 0
        %601 = vmatprep.subr.mxu0 0.0
        %602 = vmatpush1.msra.mxu0 0.0
        %603 = vmatprep.subr.mxu0 0.0
        %604 = vmatpush1.msra.mxu0 0.0
        %605 = vmatprep.subr.mxu0 0.0
        %606 = vmatpush1.msra.mxu0 0.0
        %607 = vmatprep.subr.mxu0 0.0
        %608 = vmatpush1.msra.mxu0 0.0
        %609 = vmatprep.subr.mxu0 0.0
        %610 = vmatpush1.msra.mxu0 0.0
        %611 = vmatprep.subr.mxu0 0.0
        %612 = vmatpush1.msra.mxu0 0.0
        %613 = vmatprep.subr.mxu0 0.0
        %614 = vmatpush1.msra.mxu0 0.0
        %615 = vmatprep.subr.mxu0 0.0
        %616 = vmatpush1.msra.mxu0 0.0
        %617 = vmatprep.subr.mxu0 0.0
        %618 = vmatpush1.msra.mxu0 0.0
        %619 = vmatprep.subr.mxu0 0.0
        %620 = vmatpush1.msra.mxu0 0.0
        %621 = vmatprep.subr.mxu0 0.0
        %622 = vmatpush1.msra.mxu0 0.0
        %623 = vmatprep.subr.mxu0 0.0
        %624 = vmatpush1.msra.mxu0 0.0
        %625 = vmatprep.subr.mxu0 0.0
        %626 = vmatpush1.msra.mxu0 %v544
        %627 = vmatprep.subr.mxu0 0.0
        %628 = vmatpush1.msra.mxu0 %v543
        %629 = vmatprep.subr.mxu0 0.0
        %630 = vmatpush1.msra.mxu0 %v542
        %631 = vmatprep.subr.mxu0 0.0
        %632 = vmatpush1.msra.mxu0 %v541
        %633 = vmatprep.subr.mxu0 0.0
        %634 = vmatpush2.msra.mxu0 0.0
        %635 = vmatprep.subr.mxu0 0.0
        %636 = vmatpush2.msra.mxu0 0.0
        %637 = vmatprep.subr.mxu0 0.0
        %638 = vmatpush2.msra.mxu0 0.0
        %639 = vmatprep.subr.mxu0 0.0
        %640 = vmatpush2.msra.mxu0 0.0
        %641 = vmatprep.subr.mxu0 0.0
        %642 = vmatpush2.msra.mxu0 0.0
        %643 = vmatprep.subr.mxu0 0.0
        %644 = vmatpush2.msra.mxu0 0.0
        %645 = vmatprep.subr.mxu0 0.0
        %646 = vmatpush2.msra.mxu0 0.0
        %647 = vmatprep.subr.mxu0 0.0
        %648 = vmatpush2.msra.mxu0 0.0
        %649 = vmatprep.subr.mxu0 0.0
        %650 = vmatpush2.msra.mxu0 0.0
        %651 = vmatprep.subr.mxu0 0.0
        %652 = vmatpush2.msra.mxu0 0.0
        %653 = vmatprep.subr.mxu0 0.0
        %654 = vmatpush2.msra.mxu0 0.0
        %655 = vmatprep.subr.mxu0 0.0
        %656 = vmatpush2.msra.mxu0 0.0
        %657 = vmatprep.subr.mxu0 0.0
        %658 = vmatpush2.msra.mxu0 0.0
        %659 = vmatprep.subr.mxu0 0.0
        %660 = vmatpush2.msra.mxu0 0.0
        %661 = vmatprep.subr.mxu0 0.0
        %662 = vmatpush2.msra.mxu0 0.0
        %663 = vmatprep.subr.mxu0 0.0
        %664 = vmatpush2.msra.mxu0 0.0
        %665 = vmatprep.mubr.f32.mxu0 0.0
        %666 = vmatmul.mubr.f32.gmra.mxu0 %v554
        %v667 = vpop.f32.mrf.mxu0
        %v668 = vadd.f32 %v550, %v667
        %v669 = vpop.f32.mrf.mxu0
        %670 = vmatprep.mubr.f32.mxu0 0.0
        %671 = vmatmul.mubr.f32.gmra.mxu0 %v557
        %v672 = vpop.f32.mrf.mxu0
        %v673 = vadd.f32 %v550, %v672
        %v674 = vpop.f32.mrf.mxu0
        %675 = vmatprep.mubr.f32.mxu0 0.0
        %676 = vmatmul.mubr.f32.gmra.mxu0 %v560
        %v677 = vpop.f32.mrf.mxu0
        %v678 = vadd.f32 %v550, %v677
        %v679 = vpop.f32.mrf.mxu0
        %680 = vmatprep.mubr.f32.mxu0 0.0
        %681 = vmatmul.mubr.f32.gmra.mxu0 %v563
        %v682 = vpop.f32.mrf.mxu0
        %v683 = vadd.f32 %v550, %v682
        %v684 = vpop.f32.mrf.mxu0
        %685 = vmatprep.mubr.f32.mxu0 0.0
        %686 = vmatmul.mubr.f32.gmra.mxu0 %v566
        %v687 = vpop.f32.mrf.mxu0
        %v688 = vadd.f32 %v550, %v687
        %v689 = vpop.f32.mrf.mxu0
        %690 = vmatprep.mubr.f32.mxu0 0.0
        %691 = vmatmul.mubr.f32.gmra.mxu0 %v569
        %v692 = vpop.f32.mrf.mxu0
        %v693 = vadd.f32 %v550, %v692
        %v694 = vpop.f32.mrf.mxu0
        %695 = vmatprep.mubr.f32.mxu0 0.0
        %696 = vmatmul.mubr.f32.gmra.mxu0 %v572
        %v697 = vpop.f32.mrf.mxu0
        %v698 = vadd.f32 %v550, %v697
        %v699 = vpop.f32.mrf.mxu0
        %700 = vmatprep.mubr.f32.mxu0 0.0
        %701 = vmatmul.mubr.f32.gmra.mxu0 %v575
        %v702 = vpop.f32.mrf.mxu0
        %v703 = vadd.f32 %v550, %v702
        %v704 = vpop.f32.mrf.mxu0
        %705 = vmatprep.mubr.f32.mxu0 0.0
        %706 = vmatmul.mubr.f32.gmra.mxu0 %v578
        %v707 = vpop.f32.mrf.mxu0
        %v708 = vadd.f32 %v550, %v707
        %v709 = vpop.f32.mrf.mxu0
        %710 = vmatprep.mubr.f32.mxu0 0.0
        %711 = vmatmul.mubr.f32.gmra.mxu0 %v581
        %v712 = vpop.f32.mrf.mxu0
        %v713 = vadd.f32 %v550, %v712
        %v714 = vpop.f32.mrf.mxu0
        %715 = vmatprep.mubr.f32.mxu0 0.0
        %716 = vmatmul.mubr.f32.gmra.mxu0 %v584
        %v717 = vpop.f32.mrf.mxu0
        %v718 = vadd.f32 %v550, %v717
        %v719 = vpop.f32.mrf.mxu0
        %720 = vmatprep.mubr.f32.mxu0 0.0
        %721 = vmatmul.mubr.f32.gmra.mxu0 %v587
        %v722 = vpop.f32.mrf.mxu0
        %v723 = vadd.f32 %v550, %v722
        %v724 = vpop.f32.mrf.mxu0
        %725 = vmatprep.mubr.f32.mxu0 0.0
        %726 = vmatmul.mubr.f32.gmra.mxu0 %v590
        %v727 = vpop.f32.mrf.mxu0
        %v728 = vadd.f32 %v550, %v727
        %v729 = vpop.f32.mrf.mxu0
        %730 = vmatprep.mubr.f32.mxu0 0.0
        %731 = vmatmul.mubr.f32.gmra.mxu0 %v593
        %v732 = vpop.f32.mrf.mxu0
        %v733 = vadd.f32 %v550, %v732
        %v734 = vpop.f32.mrf.mxu0
        %735 = vmatprep.mubr.f32.mxu0 0.0
        %736 = vmatmul.mubr.f32.gmra.mxu0 %v596
        %v737 = vpop.f32.mrf.mxu0
        %v738 = vadd.f32 %v550, %v737
        %v739 = vpop.f32.mrf.mxu0
        %740 = vmatprep.mubr.f32.mxu0 0.0
        %741 = vmatmul.mubr.f32.gmra.mxu0 %v599
        %v742 = vpop.f32.mrf.mxu0
        %v743 = vadd.f32 %v550, %v742
        %v744 = vpop.f32.mrf.mxu0
        %745 = vdwg.mxu0
        %v746 = vmax.f32 %v668, 0.0
        %v747 = vmax.f32 %v673, 0.0
        %v748 = vmax.f32 %v678, 0.0
        %v749 = vmax.f32 %v683, 0.0
        %v750 = vmax.f32 %v688, 0.0
        %v751 = vmax.f32 %v693, 0.0
        %v752 = vmax.f32 %v698, 0.0
        %v753 = vmax.f32 %v703, 0.0
        %v754 = vmax.f32 %v708, 0.0
        %v755 = vmax.f32 %v713, 0.0
        %v756 = vmax.f32 %v718, 0.0
        %v757 = vmax.f32 %v723, 0.0
        %v758 = vmax.f32 %v728, 0.0
        %v759 = vmax.f32 %v733, 0.0
        %v760 = vmax.f32 %v738, 0.0
        %v761 = vmax.f32 %v743, 0.0
        %v762 = vpack.c.bf16 %v747, %v746
        %v763 = vpack.c.bf16 %v749, %v748
        %v764 = vpack.c.bf16 %v751, %v750
        %v765 = vpack.c.bf16 %v753, %v752
        %v766 = vpack.c.bf16 %v755, %v754
        %v767 = vpack.c.bf16 %v757, %v756
        %v768 = vpack.c.bf16 %v759, %v758
        %v769 = vpack.c.bf16 %v761, %v760
        %v778 = vunpack.c.l.b16 %v762
        %v779 = vunpack.c.h.b16 %v762
        %v780 = vunpack.c.l.b16 %v763
        %v781 = vunpack.c.h.b16 %v763
        %v782 = vunpack.c.l.b16 %v764
        %v783 = vunpack.c.h.b16 %v764
        %v784 = vunpack.c.l.b16 %v765
        %v785 = vunpack.c.h.b16 %v765
        %v786 = vunpack.c.l.b16 %v766
        %v787 = vunpack.c.h.b16 %v766
        %v788 = vunpack.c.l.b16 %v767
        %v789 = vunpack.c.h.b16 %v767
        %v790 = vunpack.c.l.b16 %v768
        %v791 = vunpack.c.h.b16 %v768
        %v792 = vunpack.c.l.b16 %v769
        %v793 = vunpack.c.h.b16 %v769
        %v794 = vpack.c.b16 %v778, %v778
        %v795 = vpack.c.b16 %v779, %v779
        %v796 = vpack.c.b16 %v780, %v780
        %v797 = vpack.c.b16 %v781, %v781
        %v798 = vpack.c.b16 %v782, %v782
        %v799 = vpack.c.b16 %v783, %v783
        %v800 = vpack.c.b16 %v784, %v784
        %v801 = vpack.c.b16 %v785, %v785
        %v802 = vpack.c.b16 %v786, %v786
        %v803 = vpack.c.b16 %v787, %v787
        %v804 = vpack.c.b16 %v788, %v788
        %v805 = vpack.c.b16 %v789, %v789
        %v806 = vpack.c.b16 %v790, %v790
        %v807 = vpack.c.b16 %v791, %v791
        %v808 = vpack.c.b16 %v792, %v792
        %v809 = vpack.c.b16 %v793, %v793
        %826 = vst [vmem:[%s216] sm:$0xf] %v794
        %827 = vst [vmem:[%s216 + $0x4] sm:$0xf] %v795
        %828 = vst [vmem:[%s216 + $0x8] sm:$0xf] %v796
        %829 = vst [vmem:[%s216 + $0xc] sm:$0xf] %v797
        %830 = vst [vmem:[%s216 + $0x10] sm:$0xf] %v798
        %831 = vst [vmem:[%s216 + $0x14] sm:$0xf] %v799
        %832 = vst [vmem:[%s216 + $0x18] sm:$0xf] %v800
        %833 = vst [vmem:[%s216 + $0x1c] sm:$0xf] %v801
        %834 = vst [vmem:[%s216 + $0x20] sm:$0xf] %v802
        %835 = vst [vmem:[%s216 + $0x24] sm:$0xf] %v803
        %836 = vst [vmem:[%s216 + $0x28] sm:$0xf] %v804
        %837 = vst [vmem:[%s216 + $0x2c] sm:$0xf] %v805
        %838 = vst [vmem:[%s216 + $0x30] sm:$0xf] %v806
        %839 = vst [vmem:[%s216 + $0x34] sm:$0xf] %v807
        %840 = vst [vmem:[%s216 + $0x38] sm:$0xf] %v808
        %841 = vst [vmem:[%s216 + $0x3c] sm:$0xf] %v809
        %s842 = sand.u32 %s118, 1
        %s843 = scalar_lea.sflag [#allocation4], %s842
        %s844 = sand.u32 %s118, 1
        %s845 = smul.addr %s844, 64
        %s846 = scalar_lea.vmem [#allocation5], %s845
        // Predicated region
        $region41: #{tpu_custom_call.1} parent=35 // pred_check
          %p847 = pneg %p128
        $region42: #{tpu_custom_call.1} parent=35 // pred_check_branch
          %849 = sbr.rel (%p847) target = $region44
        $region43: #{tpu_custom_call.1} parent=35 // pred_region
          %s850 = smul.u32 16, %s21
          %s852 = ssub.s32 1024, 1024
          %853 = vsyncadd %s843, %s852
          %s854 = smul.addr %s850, 64
          %s855 = scalar_lea.hbm %s4, %s854
          %s856 = sshll.u32 %s846, 4
          %s857 = int_to_ptr.vmem [resolvable:$true] %s856
          %862 = dma.vmem_to_hbm [thread:$0]  %s857, 1024, %s855, %s843, 64, 64, 4
        $region44: #{tpu_custom_call.1} parent=35 // pred_fallthru
          _
      $region36: #{tpu_custom_call.1} parent=5 // pred_fallthru
        _
      %p863 = scmp.le.s32.totalorder 2, %s16
      // Predicated region
      $region45: #{tpu_custom_call.1} parent=5 // pred_check
        %p864 = pneg %p863
      $region46: #{tpu_custom_call.1} parent=5 // pred_check_branch
        %866 = sbr.rel (%p864) target = $region48
      $region47: #{tpu_custom_call.1} parent=5 // pred_region
        %s867 = ssub.s32 %s16, 2
        // Predicated region
        $region49: #{tpu_custom_call.1} parent=47 // pred_check
          %p868 = pneg %p134
        $region50: #{tpu_custom_call.1} parent=47 // pred_check_branch
          %870 = sbr.rel (%p868) target = $region52
        $region51: #{tpu_custom_call.1} parent=47 // pred_region
          %s871 = sand.u32 %s119, 1
          %s872 = scalar_lea.sflag [#allocation4], %s871
          %s873 = sand.u32 %s119, 1
          %s874 = smul.addr %s873, 64
          %s875 = scalar_lea.vmem [#allocation5], %s874
          %876 = dma.done %s872, 1024
        $region52: #{tpu_custom_call.1} parent=47 // pred_fallthru
          _
      $region48: #{tpu_custom_call.1} parent=5 // pred_fallthru
        _
    $region6: #{tpu_custom_call.1} parent=1 // loop_footer
      %s20 = sadd.s32 1, %s16
    $region7: #{tpu_custom_call.1} parent=1 // loop_footer_branch
      %15 = sbr.rel target = $region3
    $region8: #{tpu_custom_call.1} parent=1 // loop_exit
      _
    %877 = vsyncpa [#allocation3], 1
    %s878 = scalar_lea.sflag [#allocation3], 1
    %879 = vsyncpa %s878, 1
    %880 = vsyncpa [#allocation4], 1
    %s881 = scalar_lea.sflag [#allocation4], 1
    %882 = vsyncpa %s881, 1

</llo_original>
